<compile_context>
chip_gen: v6e
topology: v6e:2x2x1
jax: 0.10.0
libtpu: 0.0.40
codegen_flags: <defaults>
</compile_context>

<pallas_src>
import functools
import math

import jax
import jax.numpy as jnp
from jax import lax
from jax.experimental import pallas as pl
from jax.experimental.pallas import tpu as pltpu

_SQRT2 = math.sqrt(2.0)
_NUM_CORE_SPLITS = 2  # leading "parallel" axis; split across TCs on v7x, serial elsewhere


def _probit(p, eps=1e-6):
    # inverse CDF of the standard normal: sqrt(2) * erfinv(2p - 1)
    p = jnp.clip(p, eps, 1.0 - eps)
    return jnp.float32(_SQRT2) * lax.erf_inv(2.0 * p - 1.0)


def _pearson_r2_kernel(x_ref, y_ref, z_ref, part_ref,
                       sx_ref, sy_ref, sxy_ref, sxx_ref, syy_ref,
                       *, n_valid, tile_rows, tiles_per_core, eps_clip):
    c = pl.program_id(0)   # core-split index ("parallel")
    j = pl.program_id(1)   # batch-tile index ("arbitrary", carries accumulators)

    @pl.when(j == 0)
    def _init():
        sx_ref[...] = jnp.zeros_like(sx_ref)
        sy_ref[...] = jnp.zeros_like(sy_ref)
        sxy_ref[...] = jnp.zeros_like(sxy_ref)
        sxx_ref[...] = jnp.zeros_like(sxx_ref)
        syy_ref[...] = jnp.zeros_like(syy_ref)

    xb = x_ref[...].astype(jnp.float32)   # (TB, F), cast after DMA (native dtype in HBM)
    yb = y_ref[...].astype(jnp.float32)   # (1, TB)  lane-dense row
    zr = z_ref[...]                       # (1, F)   f32, pre-scaled by 1/sum(z) in wrapper

    # lane-dense mat-vec: (1,F) x (TB,F) contracting F -> (1, TB)
    # TODO(synk): if a bundle dump shows a full-tile vxpose here, switch to xb @ z_col
    # on the MXU and transpose only the small (TB,1) result row.
    xz = lax.dot_general(zr, xb, (((1,), (1,)), ((), ())),
                         preferred_element_type=jnp.float32)
    xz = jnp.clip(xz, eps_clip, 1.0 - eps_clip)

    xt = _probit(xz)   # (1, TB)
    yt = _probit(yb)   # (1, TB)

    # Tail mask: rows past the true batch (partial / duplicated clamped tiles) contribute 0.
    row0 = (c * tiles_per_core + j) * tile_rows
    lane = lax.broadcasted_iota(jnp.int32, (1, tile_rows), 1)
    valid = (row0 + lane) < n_valid
    xt = jnp.where(valid, xt, 0.0)
    yt = jnp.where(valid, yt, 0.0)

    # element-wise running sums (VPU only); cross-lane reduces deferred to the end
    sx_ref[...] += xt
    sy_ref[...] += yt
    sxy_ref[...] += xt * yt
    sxx_ref[...] += xt * xt
    syy_ref[...] += yt * yt

    @pl.when(j == pl.num_programs(1) - 1)
    def _finalize():
        # One cross-lane reduce per statistic, once per core; pack the 5 partial sums
        # into lanes 0..4 of sublane 0 of this core's (8,128) output block.
        # TODO(synk): per-block centered / Kahan accumulation for very large B.
        s_x = jnp.sum(sx_ref[...])
        s_y = jnp.sum(sy_ref[...])
        s_xy = jnp.sum(sxy_ref[...])
        s_xx = jnp.sum(sxx_ref[...])
        s_yy = jnp.sum(syy_ref[...])
        lane8 = lax.broadcasted_iota(jnp.int32, (8, 128), 1)
        sub8 = lax.broadcasted_iota(jnp.int32, (8, 128), 0)
        row_sel = sub8 == 0
        blk = jnp.where(row_sel & (lane8 == 0), s_x, jnp.float32(0.0))
        blk = jnp.where(row_sel & (lane8 == 1), s_y, blk)
        blk = jnp.where(row_sel & (lane8 == 2), s_xy, blk)
        blk = jnp.where(row_sel & (lane8 == 3), s_xx, blk)
        blk = jnp.where(row_sel & (lane8 == 4), s_yy, blk)
        part_ref[...] = blk


def _vmem_capacity_bytes():
    try:
        cap = int(pltpu.get_tpu_info().vmem_capacity_bytes)
        if cap > 0:
            return cap
    except Exception:
        pass
    return 128 * 2 ** 20


def _pick_batch_tile(B, F, itemsize, block_budget_bytes):
    """TB ~ block_budget / row_bytes, rounded to 128 (or 8) rows, clamped to [8, B]."""
    row_bytes = max(1, F * itemsize)
    rows = block_budget_bytes // row_bytes
    if rows >= B:
        return B                       # whole batch fits one block
    if rows >= 128:
        return int((rows // 128) * 128)
    if rows >= 8:
        return int((rows // 8) * 8)
    # TODO(synk): add a feature-axis ("arbitrary") grid dimension for very large F.
    return 8


def pearson_r2_loss(X, y, z, *, eps=1e-3, eps_var=1e-6):
    """X: (B, F), y: (B,), z: (F,)  ->  scalar Pearson R^2 loss (f32)."""
    B, F = X.shape
    itemsize = jnp.dtype(X.dtype).itemsize

    vmem_cap = _vmem_capacity_bytes()
    small_vmem = vmem_cap <= 64 * 2 ** 20        # v7x-class: 64 MiB per TC
    block_budget = (6 if small_vmem else 8) * 2 ** 20
    vmem_cap_limit = (48 if small_vmem else 64) * 2 ** 20

    TB = _pick_batch_tile(B, F, itemsize, block_budget)
    total_tiles = (B + TB - 1) // TB
    nc = _NUM_CORE_SPLITS
    tpc = (total_tiles + nc - 1) // nc           # tiles per core-split
    last_tile = total_tiles - 1
    grid = (nc, tpc)

    y_row = y.reshape(1, B)                                      # lane-dense row (native dtype)
    zf = z.astype(jnp.float32)
    z_row = (zf / jnp.sum(zf)).reshape(1, F)                     # pre-scaled: X @ z_row == X@z/z.sum()

    kernel = functools.partial(_pearson_r2_kernel, n_valid=B, tile_rows=TB,
                               tiles_per_core=tpc, eps_clip=float(eps))

    x_block_bytes = TB * F * itemsize
    need = 3 * x_block_bytes + 24 * TB * 4 + 4 * F + (2 << 20)
    vmem_limit = int(min(vmem_cap_limit, max(16 * 2 ** 20, need)))

    def tile_index(c, j):
        # Clamp so over-shooting grid steps (ragged split) re-read the last real tile;
        # the in-kernel mask zeroes their contribution.
        return jnp.minimum(c * tpc + j, last_tile)

    part = pl.pallas_call(
        kernel,
        out_shape=jax.ShapeDtypeStruct((nc * 8, 128), jnp.float32),
        grid_spec=pltpu.PrefetchScalarGridSpec(
            num_scalar_prefetch=0,
            grid=grid,
            in_specs=[
                pl.BlockSpec((TB, F), lambda c, j: (tile_index(c, j), 0)),   # X tile (native dtype)
                pl.BlockSpec((1, TB), lambda c, j: (0, tile_index(c, j))),   # y row tile
                pl.BlockSpec((1, F), lambda c, j: (0, 0)),                   # scaled z (resident)
            ],
            out_specs=pl.BlockSpec((8, 128), lambda c, j: (c, 0)),           # per-core partial sums
            scratch_shapes=[pltpu.VMEM((1, TB), jnp.float32)] * 5,
        ),
        compiler_params=pltpu.CompilerParams(
            dimension_semantics=("parallel", "arbitrary"),
            vmem_limit_bytes=vmem_limit,
        ),
    )(X, y_row, z_row)

    # Tiny final combine (a handful of scalar ops) in plain JAX.
    parts = part.reshape(nc, 8, 128)[:, 0, :]    # (nc, 128); lanes 0..4 hold the sums
    s = jnp.sum(parts, axis=0)
    inv_n = jnp.float32(1.0 / B)
    m_x = s[0] * inv_n
    m_y = s[1] * inv_n
    cov = s[2] * inv_n - m_x * m_y
    v_x = s[3] * inv_n - m_x * m_x + jnp.float32(eps_var)
    v_y = s[4] * inv_n - m_y * m_y + jnp.float32(eps_var)
    corr = cov * lax.rsqrt(v_x * v_y)
    return corr * corr


def _reference(X, y, z, eps=1e-3, eps_var=1e-6):
    X = X.astype(jnp.float32)
    y = y.astype(jnp.float32)
    z = z.astype(jnp.float32)
    x_z = jnp.clip(X @ z / jnp.sum(z), eps, 1.0 - eps)
    x_t = _probit(x_z)
    y_t = _probit(y)
    x_c = x_t - jnp.mean(x_t)
    y_c = y_t - jnp.mean(y_t)
    cov = jnp.sum(x_c * y_c) / X.shape[0]
    v_x = jnp.mean(x_c ** 2) + eps_var
    v_y = jnp.mean(y_c ** 2) + eps_var
    corr = cov / jnp.sqrt(v_x * v_y)
    return corr ** 2


if __name__ == "__main__":
    key = jax.random.PRNGKey(0)
    kx, ky, kz = jax.random.split(key, 3)

    B, F = 64, 32
    # X rows ~ per-feature probabilities, y ~ target probabilities in (0, 1),
    # z ~ positive feature weights (so X @ z / z.sum() stays in (0, 1)).
    X = jax.random.uniform(kx, (B, F), dtype=jnp.float32, minval=0.05, maxval=0.95)
    y = jax.random.uniform(ky, (B,), dtype=jnp.float32, minval=0.05, maxval=0.95)
    z = jax.random.uniform(kz, (F,), dtype=jnp.float32, minval=0.1, maxval=1.0)

    loss = jax.block_until_ready(pearson_r2_loss(X, y, z))
    ref = jax.block_until_ready(_reference(X, y, z))

    assert loss.shape == ()
    assert bool(jnp.isfinite(loss))
    assert abs(float(loss) - float(ref)) < 5e-3, (float(loss), float(ref))
    print("KERNEL_OK")
</pallas_src>

<mosaic_0001>
module attributes {stable_mosaic.version = 11 : i64} {
  func.func @_pearson_r2_kernel(%arg0: i32, %arg1: i32, %arg2: memref<64x32xf32, #tpu.memory_space<vmem>>, %arg3: memref<1x64xf32, #tpu.memory_space<vmem>>, %arg4: memref<1x32xf32, #tpu.memory_space<vmem>>, %arg5: memref<8x128xf32, #tpu.memory_space<vmem>>, %arg6: memref<1x64xf32, #tpu.memory_space<vmem>>, %arg7: memref<1x64xf32, #tpu.memory_space<vmem>>, %arg8: memref<1x64xf32, #tpu.memory_space<vmem>>, %arg9: memref<1x64xf32, #tpu.memory_space<vmem>>, %arg10: memref<1x64xf32, #tpu.memory_space<vmem>>) attributes {dimension_semantics = [#tpu.dimension_semantics<parallel>, #tpu.dimension_semantics<arbitrary>], iteration_bounds = array<i64: 2, 1>, scalar_prefetch = 0 : i64, scratch_operands = 5 : i64, tpu.core_type = #tpu.core_type<tc>, window_params = [{transform_indices = @transform_0, window_bounds = array<i64: 64, 32>}, {transform_indices = @transform_1, window_bounds = array<i64: 1, 64>}, {pipeline_mode = #tpu.pipeline_mode<synchronous>, transform_indices = @transform_2, window_bounds = array<i64: 1, 32>}, {transform_indices = @transform_3, window_bounds = array<i64: 8, 128>}]} {
    %c0_i32 = arith.constant 0 : i32
    %0 = arith.cmpi eq, %arg1, %c0_i32 : i32
    %1 = arith.extui %0 : i1 to i32
    %c0_i32_0 = arith.constant 0 : i32
    %2 = arith.cmpi ne, %1, %c0_i32_0 : i32
    scf.if %2 {
      %cst_93 = arith.constant 0.000000e+00 : f32
      %192 = vector.broadcast %cst_93 : f32 to vector<1x64xf32>
      %c0_94 = arith.constant 0 : index
      %c0_95 = arith.constant 0 : index
      %193 = vector.load %arg6[%c0_94, %c0_95] : memref<1x64xf32, #tpu.memory_space<vmem>>, vector<1x64xf32>
      tpu.vector_store %arg6[%c0_94, %c0_95], %192 {strides = array<i32>} : memref<1x64xf32, #tpu.memory_space<vmem>>, vector<1x64xf32>,
      %cst_96 = arith.constant 0.000000e+00 : f32
      %194 = vector.broadcast %cst_96 : f32 to vector<1x64xf32>
      %c0_97 = arith.constant 0 : index
      %c0_98 = arith.constant 0 : index
      %195 = vector.load %arg7[%c0_97, %c0_98] : memref<1x64xf32, #tpu.memory_space<vmem>>, vector<1x64xf32>
      tpu.vector_store %arg7[%c0_97, %c0_98], %194 {strides = array<i32>} : memref<1x64xf32, #tpu.memory_space<vmem>>, vector<1x64xf32>,
      %cst_99 = arith.constant 0.000000e+00 : f32
      %196 = vector.broadcast %cst_99 : f32 to vector<1x64xf32>
      %c0_100 = arith.constant 0 : index
      %c0_101 = arith.constant 0 : index
      %197 = vector.load %arg8[%c0_100, %c0_101] : memref<1x64xf32, #tpu.memory_space<vmem>>, vector<1x64xf32>
      tpu.vector_store %arg8[%c0_100, %c0_101], %196 {strides = array<i32>} : memref<1x64xf32, #tpu.memory_space<vmem>>, vector<1x64xf32>,
      %cst_102 = arith.constant 0.000000e+00 : f32
      %198 = vector.broadcast %cst_102 : f32 to vector<1x64xf32>
      %c0_103 = arith.constant 0 : index
      %c0_104 = arith.constant 0 : index
      %199 = vector.load %arg9[%c0_103, %c0_104] : memref<1x64xf32, #tpu.memory_space<vmem>>, vector<1x64xf32>
      tpu.vector_store %arg9[%c0_103, %c0_104], %198 {strides = array<i32>} : memref<1x64xf32, #tpu.memory_space<vmem>>, vector<1x64xf32>,
      %cst_105 = arith.constant 0.000000e+00 : f32
      %200 = vector.broadcast %cst_105 : f32 to vector<1x64xf32>
      %c0_106 = arith.constant 0 : index
      %c0_107 = arith.constant 0 : index
      %201 = vector.load %arg10[%c0_106, %c0_107] : memref<1x64xf32, #tpu.memory_space<vmem>>, vector<1x64xf32>
      tpu.vector_store %arg10[%c0_106, %c0_107], %200 {strides = array<i32>} : memref<1x64xf32, #tpu.memory_space<vmem>>, vector<1x64xf32>,
    } else {
    }
    %c0 = arith.constant 0 : index
    %c0_1 = arith.constant 0 : index
    %3 = vector.load %arg2[%c0, %c0_1] : memref<64x32xf32, #tpu.memory_space<vmem>>, vector<64x32xf32>
    %c0_2 = arith.constant 0 : index
    %c0_3 = arith.constant 0 : index
    %4 = vector.load %arg3[%c0_2, %c0_3] : memref<1x64xf32, #tpu.memory_space<vmem>>, vector<1x64xf32>
    %c0_4 = arith.constant 0 : index
    %c0_5 = arith.constant 0 : index
    %5 = vector.load %arg4[%c0_4, %c0_5] : memref<1x32xf32, #tpu.memory_space<vmem>>, vector<1x32xf32>
    %cst = arith.constant dense<0.000000e+00> : vector<1x64xf32>
    %6 = tpu.matmul %5, %3, %cst {dimension_numbers = #tpu.dot_dimension_numbers<[1], [1], [0], [0], [0, 0, 1, 0], [], []>} : vector<1x32xf32>, vector<64x32xf32>, vector<1x64xf32> -> vector<1x64xf32>
    %cst_6 = arith.constant 1.000000e-03 : f32
    %cst_7 = arith.constant 9.990000e-01 : f32
    %7 = vector.broadcast %cst_6 : f32 to vector<1x64xf32>
    %8 = arith.maximumf %7, %6 : vector<1x64xf32>
    %9 = vector.broadcast %cst_7 : f32 to vector<1x64xf32>
    %10 = arith.minimumf %9, %8 : vector<1x64xf32>
    %cst_8 = arith.constant 9.99999997E-7 : f32
    %cst_9 = arith.constant 0.999998986 : f32
    %11 = vector.broadcast %cst_8 : f32 to vector<1x64xf32>
    %12 = arith.maximumf %11, %10 : vector<1x64xf32>
    %13 = vector.broadcast %cst_9 : f32 to vector<1x64xf32>
    %14 = arith.minimumf %13, %12 : vector<1x64xf32>
    %cst_10 = arith.constant 2.000000e+00 : f32
    %15 = vector.broadcast %cst_10 : f32 to vector<1x64xf32>
    %16 = arith.mulf %15, %14 : vector<1x64xf32>
    %cst_11 = arith.constant 1.000000e+00 : f32
    %17 = vector.broadcast %cst_11 : f32 to vector<1x64xf32>
    %18 = arith.subf %16, %17 : vector<1x64xf32>
    %cst_12 = arith.constant 0.000000e+00 : f32
    %19 = vector.broadcast %cst_12 : f32 to vector<1x64xf32>
    %20 = arith.subf %19, %18 : vector<1x64xf32>
    %21 = arith.mulf %18, %20 : vector<1x64xf32>
    %22 = math.log1p %21 : vector<1x64xf32>
    %cst_13 = arith.constant 0.000000e+00 : f32
    %23 = vector.broadcast %cst_13 : f32 to vector<1x64xf32>
    %24 = arith.subf %23, %22 : vector<1x64xf32>
    %cst_14 = arith.constant 5.000000e+00 : f32
    %25 = vector.broadcast %cst_14 : f32 to vector<1x64xf32>
    %26 = arith.cmpf olt, %24, %25 : vector<1x64xf32>
    %cst_15 = arith.constant 2.500000e+00 : f32
    %27 = vector.broadcast %cst_15 : f32 to vector<1x64xf32>
    %28 = arith.subf %24, %27 : vector<1x64xf32>
    %29 = math.sqrt %24 : vector<1x64xf32>
    %cst_16 = arith.constant 3.000000e+00 : f32
    %30 = vector.broadcast %cst_16 : f32 to vector<1x64xf32>
    %31 = arith.subf %29, %30 : vector<1x64xf32>
    %32 = arith.select %26, %28, %31 : vector<1x64xi1>, vector<1x64xf32>
    %cst_17 = arith.constant 2.81022636E-8 : f32
    %cst_18 = arith.constant -2.00214257E-4 : f32
    %33 = vector.broadcast %cst_17 : f32 to vector<1x64xf32>
    %34 = vector.broadcast %cst_18 : f32 to vector<1x64xf32>
    %35 = arith.select %26, %33, %34 : vector<1x64xi1>, vector<1x64xf32>
    %cst_19 = arith.constant 3.43273939E-7 : f32
    %cst_20 = arith.constant 1.00950558E-4 : f32
    %36 = vector.broadcast %cst_19 : f32 to vector<1x64xf32>
    %37 = vector.broadcast %cst_20 : f32 to vector<1x64xf32>
    %38 = arith.select %26, %36, %37 : vector<1x64xi1>, vector<1x64xf32>
    %39 = arith.mulf %35, %32 : vector<1x64xf32>
    %40 = arith.addf %38, %39 : vector<1x64xf32>
    %cst_21 = arith.constant -3.5233877E-6 : f32
    %cst_22 = arith.constant 0.00134934322 : f32
    %41 = vector.broadcast %cst_21 : f32 to vector<1x64xf32>
    %42 = vector.broadcast %cst_22 : f32 to vector<1x64xf32>
    %43 = arith.select %26, %41, %42 : vector<1x64xi1>, vector<1x64xf32>
    %44 = arith.mulf %40, %32 : vector<1x64xf32>
    %45 = arith.addf %43, %44 : vector<1x64xf32>
    %cst_23 = arith.constant -4.39150654E-6 : f32
    %cst_24 = arith.constant -0.00367342844 : f32
    %46 = vector.broadcast %cst_23 : f32 to vector<1x64xf32>
    %47 = vector.broadcast %cst_24 : f32 to vector<1x64xf32>
    %48 = arith.select %26, %46, %47 : vector<1x64xi1>, vector<1x64xf32>
    %49 = arith.mulf %45, %32 : vector<1x64xf32>
    %50 = arith.addf %48, %49 : vector<1x64xf32>
    %cst_25 = arith.constant 2.1858087E-4 : f32
    %cst_26 = arith.constant 0.00573950773 : f32
    %51 = vector.broadcast %cst_25 : f32 to vector<1x64xf32>
    %52 = vector.broadcast %cst_26 : f32 to vector<1x64xf32>
    %53 = arith.select %26, %51, %52 : vector<1x64xi1>, vector<1x64xf32>
    %54 = arith.mulf %50, %32 : vector<1x64xf32>
    %55 = arith.addf %53, %54 : vector<1x64xf32>
    %cst_27 = arith.constant -0.00125372503 : f32
    %cst_28 = arith.constant -0.0076224613 : f32
    %56 = vector.broadcast %cst_27 : f32 to vector<1x64xf32>
    %57 = vector.broadcast %cst_28 : f32 to vector<1x64xf32>
    %58 = arith.select %26, %56, %57 : vector<1x64xi1>, vector<1x64xf32>
    %59 = arith.mulf %55, %32 : vector<1x64xf32>
    %60 = arith.addf %58, %59 : vector<1x64xf32>
    %cst_29 = arith.constant -0.00417768164 : f32
    %cst_30 = arith.constant 0.00943887047 : f32
    %61 = vector.broadcast %cst_29 : f32 to vector<1x64xf32>
    %62 = vector.broadcast %cst_30 : f32 to vector<1x64xf32>
    %63 = arith.select %26, %61, %62 : vector<1x64xi1>, vector<1x64xf32>
    %64 = arith.mulf %60, %32 : vector<1x64xf32>
    %65 = arith.addf %63, %64 : vector<1x64xf32>
    %cst_31 = arith.constant 0.246640727 : f32
    %cst_32 = arith.constant 1.00167406 : f32
    %66 = vector.broadcast %cst_31 : f32 to vector<1x64xf32>
    %67 = vector.broadcast %cst_32 : f32 to vector<1x64xf32>
    %68 = arith.select %26, %66, %67 : vector<1x64xi1>, vector<1x64xf32>
    %69 = arith.mulf %65, %32 : vector<1x64xf32>
    %70 = arith.addf %68, %69 : vector<1x64xf32>
    %cst_33 = arith.constant 1.50140941 : f32
    %cst_34 = arith.constant 2.83297682 : f32
    %71 = vector.broadcast %cst_33 : f32 to vector<1x64xf32>
    %72 = vector.broadcast %cst_34 : f32 to vector<1x64xf32>
    %73 = arith.select %26, %71, %72 : vector<1x64xi1>, vector<1x64xf32>
    %74 = arith.mulf %70, %32 : vector<1x64xf32>
    %75 = arith.addf %73, %74 : vector<1x64xf32>
    %76 = math.absf %18 : vector<1x64xf32>
    %cst_35 = arith.constant 1.000000e+00 : f32
    %77 = vector.broadcast %cst_35 : f32 to vector<1x64xf32>
    %78 = arith.cmpf oeq, %76, %77 : vector<1x64xf32>
    %cst_36 = arith.constant 0x7F800000 : f32
    %79 = vector.broadcast %cst_36 : f32 to vector<1x64xf32>
    %80 = arith.mulf %79, %18 : vector<1x64xf32>
    %81 = arith.mulf %75, %18 : vector<1x64xf32>
    %82 = arith.select %78, %80, %81 : vector<1x64xi1>, vector<1x64xf32>
    %cst_37 = arith.constant 1.41421354 : f32
    %83 = vector.broadcast %cst_37 : f32 to vector<1x64xf32>
    %84 = arith.mulf %83, %82 : vector<1x64xf32>
    %cst_38 = arith.constant 9.99999997E-7 : f32
    %cst_39 = arith.constant 0.999998986 : f32
    %85 = vector.broadcast %cst_38 : f32 to vector<1x64xf32>
    %86 = arith.maximumf %85, %4 : vector<1x64xf32>
    %87 = vector.broadcast %cst_39 : f32 to vector<1x64xf32>
    %88 = arith.minimumf %87, %86 : vector<1x64xf32>
    %cst_40 = arith.constant 2.000000e+00 : f32
    %89 = vector.broadcast %cst_40 : f32 to vector<1x64xf32>
    %90 = arith.mulf %89, %88 : vector<1x64xf32>
    %cst_41 = arith.constant 1.000000e+00 : f32
    %91 = vector.broadcast %cst_41 : f32 to vector<1x64xf32>
    %92 = arith.subf %90, %91 : vector<1x64xf32>
    %cst_42 = arith.constant 0.000000e+00 : f32
    %93 = vector.broadcast %cst_42 : f32 to vector<1x64xf32>
    %94 = arith.subf %93, %92 : vector<1x64xf32>
    %95 = arith.mulf %92, %94 : vector<1x64xf32>
    %96 = math.log1p %95 : vector<1x64xf32>
    %cst_43 = arith.constant 0.000000e+00 : f32
    %97 = vector.broadcast %cst_43 : f32 to vector<1x64xf32>
    %98 = arith.subf %97, %96 : vector<1x64xf32>
    %cst_44 = arith.constant 5.000000e+00 : f32
    %99 = vector.broadcast %cst_44 : f32 to vector<1x64xf32>
    %100 = arith.cmpf olt, %98, %99 : vector<1x64xf32>
    %cst_45 = arith.constant 2.500000e+00 : f32
    %101 = vector.broadcast %cst_45 : f32 to vector<1x64xf32>
    %102 = arith.subf %98, %101 : vector<1x64xf32>
    %103 = math.sqrt %98 : vector<1x64xf32>
    %cst_46 = arith.constant 3.000000e+00 : f32
    %104 = vector.broadcast %cst_46 : f32 to vector<1x64xf32>
    %105 = arith.subf %103, %104 : vector<1x64xf32>
    %106 = arith.select %100, %102, %105 : vector<1x64xi1>, vector<1x64xf32>
    %cst_47 = arith.constant 2.81022636E-8 : f32
    %cst_48 = arith.constant -2.00214257E-4 : f32
    %107 = vector.broadcast %cst_47 : f32 to vector<1x64xf32>
    %108 = vector.broadcast %cst_48 : f32 to vector<1x64xf32>
    %109 = arith.select %100, %107, %108 : vector<1x64xi1>, vector<1x64xf32>
    %cst_49 = arith.constant 3.43273939E-7 : f32
    %cst_50 = arith.constant 1.00950558E-4 : f32
    %110 = vector.broadcast %cst_49 : f32 to vector<1x64xf32>
    %111 = vector.broadcast %cst_50 : f32 to vector<1x64xf32>
    %112 = arith.select %100, %110, %111 : vector<1x64xi1>, vector<1x64xf32>
    %113 = arith.mulf %109, %106 : vector<1x64xf32>
    %114 = arith.addf %112, %113 : vector<1x64xf32>
    %cst_51 = arith.constant -3.5233877E-6 : f32
    %cst_52 = arith.constant 0.00134934322 : f32
    %115 = vector.broadcast %cst_51 : f32 to vector<1x64xf32>
    %116 = vector.broadcast %cst_52 : f32 to vector<1x64xf32>
    %117 = arith.select %100, %115, %116 : vector<1x64xi1>, vector<1x64xf32>
    %118 = arith.mulf %114, %106 : vector<1x64xf32>
    %119 = arith.addf %117, %118 : vector<1x64xf32>
    %cst_53 = arith.constant -4.39150654E-6 : f32
    %cst_54 = arith.constant -0.00367342844 : f32
    %120 = vector.broadcast %cst_53 : f32 to vector<1x64xf32>
    %121 = vector.broadcast %cst_54 : f32 to vector<1x64xf32>
    %122 = arith.select %100, %120, %121 : vector<1x64xi1>, vector<1x64xf32>
    %123 = arith.mulf %119, %106 : vector<1x64xf32>
    %124 = arith.addf %122, %123 : vector<1x64xf32>
    %cst_55 = arith.constant 2.1858087E-4 : f32
    %cst_56 = arith.constant 0.00573950773 : f32
    %125 = vector.broadcast %cst_55 : f32 to vector<1x64xf32>
    %126 = vector.broadcast %cst_56 : f32 to vector<1x64xf32>
    %127 = arith.select %100, %125, %126 : vector<1x64xi1>, vector<1x64xf32>
    %128 = arith.mulf %124, %106 : vector<1x64xf32>
    %129 = arith.addf %127, %128 : vector<1x64xf32>
    %cst_57 = arith.constant -0.00125372503 : f32
    %cst_58 = arith.constant -0.0076224613 : f32
    %130 = vector.broadcast %cst_57 : f32 to vector<1x64xf32>
    %131 = vector.broadcast %cst_58 : f32 to vector<1x64xf32>
    %132 = arith.select %100, %130, %131 : vector<1x64xi1>, vector<1x64xf32>
    %133 = arith.mulf %129, %106 : vector<1x64xf32>
    %134 = arith.addf %132, %133 : vector<1x64xf32>
    %cst_59 = arith.constant -0.00417768164 : f32
    %cst_60 = arith.constant 0.00943887047 : f32
    %135 = vector.broadcast %cst_59 : f32 to vector<1x64xf32>
    %136 = vector.broadcast %cst_60 : f32 to vector<1x64xf32>
    %137 = arith.select %100, %135, %136 : vector<1x64xi1>, vector<1x64xf32>
    %138 = arith.mulf %134, %106 : vector<1x64xf32>
    %139 = arith.addf %137, %138 : vector<1x64xf32>
    %cst_61 = arith.constant 0.246640727 : f32
    %cst_62 = arith.constant 1.00167406 : f32
    %140 = vector.broadcast %cst_61 : f32 to vector<1x64xf32>
    %141 = vector.broadcast %cst_62 : f32 to vector<1x64xf32>
    %142 = arith.select %100, %140, %141 : vector<1x64xi1>, vector<1x64xf32>
    %143 = arith.mulf %139, %106 : vector<1x64xf32>
    %144 = arith.addf %142, %143 : vector<1x64xf32>
    %cst_63 = arith.constant 1.50140941 : f32
    %cst_64 = arith.constant 2.83297682 : f32
    %145 = vector.broadcast %cst_63 : f32 to vector<1x64xf32>
    %146 = vector.broadcast %cst_64 : f32 to vector<1x64xf32>
    %147 = arith.select %100, %145, %146 : vector<1x64xi1>, vector<1x64xf32>
    %148 = arith.mulf %144, %106 : vector<1x64xf32>
    %149 = arith.addf %147, %148 : vector<1x64xf32>
    %150 = math.absf %92 : vector<1x64xf32>
    %cst_65 = arith.constant 1.000000e+00 : f32
    %151 = vector.broadcast %cst_65 : f32 to vector<1x64xf32>
    %152 = arith.cmpf oeq, %150, %151 : vector<1x64xf32>
    %cst_66 = arith.constant 0x7F800000 : f32
    %153 = vector.broadcast %cst_66 : f32 to vector<1x64xf32>
    %154 = arith.mulf %153, %92 : vector<1x64xf32>
    %155 = arith.mulf %149, %92 : vector<1x64xf32>
    %156 = arith.select %152, %154, %155 : vector<1x64xi1>, vector<1x64xf32>
    %cst_67 = arith.constant 1.41421354 : f32
    %157 = vector.broadcast %cst_67 : f32 to vector<1x64xf32>
    %158 = arith.mulf %157, %156 : vector<1x64xf32>
    %c1_i32 = arith.constant 1 : i32
    %159 = arith.muli %arg0, %c1_i32 : i32
    %160 = arith.addi %159, %arg1 : i32
    %c64_i32 = arith.constant 64 : i32
    %161 = arith.muli %160, %c64_i32 : i32
    %162 = tpu.iota {dimensions = array<i32: 1>} : vector<1x64xi32>
    %163 = vector.broadcast %161 : i32 to vector<1x64xi32>
    %164 = arith.addi %163, %162 : vector<1x64xi32>
    %c64_i32_68 = arith.constant 64 : i32
    %165 = vector.broadcast %c64_i32_68 : i32 to vector<1x64xi32>
    %166 = arith.cmpi slt, %164, %165 : vector<1x64xi32>
    %cst_69 = arith.constant 0.000000e+00 : f32
    %167 = vector.broadcast %cst_69 : f32 to vector<1x64xf32>
    %168 = arith.select %166, %84, %167 : vector<1x64xi1>, vector<1x64xf32>
    %cst_70 = arith.constant 0.000000e+00 : f32
    %169 = vector.broadcast %cst_70 : f32 to vector<1x64xf32>
    %170 = arith.select %166, %158, %169 : vector<1x64xi1>, vector<1x64xf32>
    %c0_71 = arith.constant 0 : index
    %c0_72 = arith.constant 0 : index
    %171 = vector.load %arg6[%c0_71, %c0_72] : memref<1x64xf32, #tpu.memory_space<vmem>>, vector<1x64xf32>
    %172 = arith.addf %171, %168 : vector<1x64xf32>
    %c0_73 = arith.constant 0 : index
    %c0_74 = arith.constant 0 : index
    %173 = vector.load %arg6[%c0_73, %c0_74] : memref<1x64xf32, #tpu.memory_space<vmem>>, vector<1x64xf32>
    tpu.vector_store %arg6[%c0_73, %c0_74], %172 {strides = array<i32>} : memref<1x64xf32, #tpu.memory_space<vmem>>, vector<1x64xf32>,
    %c0_75 = arith.constant 0 : index
    %c0_76 = arith.constant 0 : index
    %174 = vector.load %arg7[%c0_75, %c0_76] : memref<1x64xf32, #tpu.memory_space<vmem>>, vector<1x64xf32>
    %175 = arith.addf %174, %170 : vector<1x64xf32>
    %c0_77 = arith.constant 0 : index
    %c0_78 = arith.constant 0 : index
    %176 = vector.load %arg7[%c0_77, %c0_78] : memref<1x64xf32, #tpu.memory_space<vmem>>, vector<1x64xf32>
    tpu.vector_store %arg7[%c0_77, %c0_78], %175 {strides = array<i32>} : memref<1x64xf32, #tpu.memory_space<vmem>>, vector<1x64xf32>,
    %c0_79 = arith.constant 0 : index
    %c0_80 = arith.constant 0 : index
    %177 = vector.load %arg8[%c0_79, %c0_80] : memref<1x64xf32, #tpu.memory_space<vmem>>, vector<1x64xf32>
    %178 = arith.mulf %168, %170 : vector<1x64xf32>
    %179 = arith.addf %177, %178 : vector<1x64xf32>
    %c0_81 = arith.constant 0 : index
    %c0_82 = arith.constant 0 : index
    %180 = vector.load %arg8[%c0_81, %c0_82] : memref<1x64xf32, #tpu.memory_space<vmem>>, vector<1x64xf32>
    tpu.vector_store %arg8[%c0_81, %c0_82], %179 {strides = array<i32>} : memref<1x64xf32, #tpu.memory_space<vmem>>, vector<1x64xf32>,
    %c0_83 = arith.constant 0 : index
    %c0_84 = arith.constant 0 : index
    %181 = vector.load %arg9[%c0_83, %c0_84] : memref<1x64xf32, #tpu.memory_space<vmem>>, vector<1x64xf32>
    %182 = arith.mulf %168, %168 : vector<1x64xf32>
    %183 = arith.addf %181, %182 : vector<1x64xf32>
    %c0_85 = arith.constant 0 : index
    %c0_86 = arith.constant 0 : index
    %184 = vector.load %arg9[%c0_85, %c0_86] : memref<1x64xf32, #tpu.memory_space<vmem>>, vector<1x64xf32>
    tpu.vector_store %arg9[%c0_85, %c0_86], %183 {strides = array<i32>} : memref<1x64xf32, #tpu.memory_space<vmem>>, vector<1x64xf32>,
    %c0_87 = arith.constant 0 : index
    %c0_88 = arith.constant 0 : index
    %185 = vector.load %arg10[%c0_87, %c0_88] : memref<1x64xf32, #tpu.memory_space<vmem>>, vector<1x64xf32>
    %186 = arith.mulf %170, %170 : vector<1x64xf32>
    %187 = arith.addf %185, %186 : vector<1x64xf32>
    %c0_89 = arith.constant 0 : index
    %c0_90 = arith.constant 0 : index
    %188 = vector.load %arg10[%c0_89, %c0_90] : memref<1x64xf32, #tpu.memory_space<vmem>>, vector<1x64xf32>
    tpu.vector_store %arg10[%c0_89, %c0_90], %187 {strides = array<i32>} : memref<1x64xf32, #tpu.memory_space<vmem>>, vector<1x64xf32>,
    %c0_i32_91 = arith.constant 0 : i32
    %189 = arith.cmpi eq, %arg1, %c0_i32_91 : i32
    %190 = arith.extui %189 : i1 to i32
    %c0_i32_92 = arith.constant 0 : i32
    %191 = arith.cmpi ne, %190, %c0_i32_92 : i32
    scf.if %191 {
      %c0_93 = arith.constant 0 : index
      %c0_94 = arith.constant 0 : index
      %192 = vector.load %arg6[%c0_93, %c0_94] : memref<1x64xf32, #tpu.memory_space<vmem>>, vector<1x64xf32>
      %193 = vector.shape_cast %192 : vector<1x64xf32> to vector<1x1x64xf32>
      %cst_95 = arith.constant dense<0.000000e+00> : vector<1xf32>
      %194 = vector.multi_reduction <add>, %193, %cst_95 [1, 2] : vector<1x1x64xf32> to vector<1xf32>
      %195 = vector.shape_cast %194 : vector<1xf32> to vector<1x1x1xf32>
      %196 = vector.extract %195[0, 0, 0] : f32 from vector<1x1x1xf32>
      %c0_96 = arith.constant 0 : index
      %c0_97 = arith.constant 0 : index
      %197 = vector.load %arg7[%c0_96, %c0_97] : memref<1x64xf32, #tpu.memory_space<vmem>>, vector<1x64xf32>
      %198 = vector.shape_cast %197 : vector<1x64xf32> to vector<1x1x64xf32>
      %cst_98 = arith.constant dense<0.000000e+00> : vector<1xf32>
      %199 = vector.multi_reduction <add>, %198, %cst_98 [1, 2] : vector<1x1x64xf32> to vector<1xf32>
      %200 = vector.shape_cast %199 : vector<1xf32> to vector<1x1x1xf32>
      %201 = vector.extract %200[0, 0, 0] : f32 from vector<1x1x1xf32>
      %c0_99 = arith.constant 0 : index
      %c0_100 = arith.constant 0 : index
      %202 = vector.load %arg8[%c0_99, %c0_100] : memref<1x64xf32, #tpu.memory_space<vmem>>, vector<1x64xf32>
      %203 = vector.shape_cast %202 : vector<1x64xf32> to vector<1x1x64xf32>
      %cst_101 = arith.constant dense<0.000000e+00> : vector<1xf32>
      %204 = vector.multi_reduction <add>, %203, %cst_101 [1, 2] : vector<1x1x64xf32> to vector<1xf32>
      %205 = vector.shape_cast %204 : vector<1xf32> to vector<1x1x1xf32>
      %206 = vector.extract %205[0, 0, 0] : f32 from vector<1x1x1xf32>
      %c0_102 = arith.constant 0 : index
      %c0_103 = arith.constant 0 : index
      %207 = vector.load %arg9[%c0_102, %c0_103] : memref<1x64xf32, #tpu.memory_space<vmem>>, vector<1x64xf32>
      %208 = vector.shape_cast %207 : vector<1x64xf32> to vector<1x1x64xf32>
      %cst_104 = arith.constant dense<0.000000e+00> : vector<1xf32>
      %209 = vector.multi_reduction <add>, %208, %cst_104 [1, 2] : vector<1x1x64xf32> to vector<1xf32>
      %210 = vector.shape_cast %209 : vector<1xf32> to vector<1x1x1xf32>
      %211 = vector.extract %210[0, 0, 0] : f32 from vector<1x1x1xf32>
      %c0_105 = arith.constant 0 : index
      %c0_106 = arith.constant 0 : index
      %212 = vector.load %arg10[%c0_105, %c0_106] : memref<1x64xf32, #tpu.memory_space<vmem>>, vector<1x64xf32>
      %213 = vector.shape_cast %212 : vector<1x64xf32> to vector<1x1x64xf32>
      %cst_107 = arith.constant dense<0.000000e+00> : vector<1xf32>
      %214 = vector.multi_reduction <add>, %213, %cst_107 [1, 2] : vector<1x1x64xf32> to vector<1xf32>
      %215 = vector.shape_cast %214 : vector<1xf32> to vector<1x1x1xf32>
      %216 = vector.extract %215[0, 0, 0] : f32 from vector<1x1x1xf32>
      %217 = tpu.iota {dimensions = array<i32: 1>} : vector<8x128xi32>
      %218 = tpu.iota {dimensions = array<i32: 0>} : vector<8x128xi32>
      %c0_i32_108 = arith.constant 0 : i32
      %219 = vector.broadcast %c0_i32_108 : i32 to vector<8x128xi32>
      %220 = arith.cmpi eq, %218, %219 : vector<8x128xi32>
      %c0_i32_109 = arith.constant 0 : i32
      %221 = vector.broadcast %c0_i32_109 : i32 to vector<8x128xi32>
      %222 = arith.cmpi eq, %217, %221 : vector<8x128xi32>
      %223 = arith.andi %220, %222 : vector<8x128xi1>
      %cst_110 = arith.constant 0.000000e+00 : f32
      %224 = vector.broadcast %196 : f32 to vector<8x128xf32>
      %225 = vector.broadcast %cst_110 : f32 to vector<8x128xf32>
      %226 = arith.select %223, %224, %225 : vector<8x128xi1>, vector<8x128xf32>
      %c1_i32_111 = arith.constant 1 : i32
      %227 = vector.broadcast %c1_i32_111 : i32 to vector<8x128xi32>
      %228 = arith.cmpi eq, %217, %227 : vector<8x128xi32>
      %229 = arith.andi %220, %228 : vector<8x128xi1>
      %230 = vector.broadcast %201 : f32 to vector<8x128xf32>
      %231 = arith.select %229, %230, %226 : vector<8x128xi1>, vector<8x128xf32>
      %c2_i32 = arith.constant 2 : i32
      %232 = vector.broadcast %c2_i32 : i32 to vector<8x128xi32>
      %233 = arith.cmpi eq, %217, %232 : vector<8x128xi32>
      %234 = arith.andi %220, %233 : vector<8x128xi1>
      %235 = vector.broadcast %206 : f32 to vector<8x128xf32>
      %236 = arith.select %234, %235, %231 : vector<8x128xi1>, vector<8x128xf32>
      %c3_i32 = arith.constant 3 : i32
      %237 = vector.broadcast %c3_i32 : i32 to vector<8x128xi32>
      %238 = arith.cmpi eq, %217, %237 : vector<8x128xi32>
      %239 = arith.andi %220, %238 : vector<8x128xi1>
      %240 = vector.broadcast %211 : f32 to vector<8x128xf32>
      %241 = arith.select %239, %240, %236 : vector<8x128xi1>, vector<8x128xf32>
      %c4_i32 = arith.constant 4 : i32
      %242 = vector.broadcast %c4_i32 : i32 to vector<8x128xi32>
      %243 = arith.cmpi eq, %217, %242 : vector<8x128xi32>
      %244 = arith.andi %220, %243 : vector<8x128xi1>
      %245 = vector.broadcast %216 : f32 to vector<8x128xf32>
      %246 = arith.select %244, %245, %241 : vector<8x128xi1>, vector<8x128xf32>
      %c0_112 = arith.constant 0 : index
      %c0_113 = arith.constant 0 : index
      %247 = vector.load %arg5[%c0_112, %c0_113] : memref<8x128xf32, #tpu.memory_space<vmem>>, vector<8x128xf32>
      tpu.vector_store %arg5[%c0_112, %c0_113], %246 {strides = array<i32>} : memref<8x128xf32, #tpu.memory_space<vmem>>, vector<8x128xf32>,
    } else {
    }
    return
  }
  func.func @transform_0(%arg0: i32, %arg1: i32) -> (i32, i32) {
    %c1_i32 = arith.constant 1 : i32
    %0 = arith.muli %arg0, %c1_i32 : i32
    %1 = arith.addi %0, %arg1 : i32
    %c0_i32 = arith.constant 0 : i32
    %2 = arith.minsi %1, %c0_i32 : i32
    %c0_i32_0 = arith.constant 0 : i32
    %c0_i32_1 = arith.constant 0 : i32
    return %2, %c0_i32_0 : i32, i32
  }
  func.func @transform_1(%arg0: i32, %arg1: i32) -> (i32, i32) {
    %c1_i32 = arith.constant 1 : i32
    %0 = arith.muli %arg0, %c1_i32 : i32
    %1 = arith.addi %0, %arg1 : i32
    %c0_i32 = arith.constant 0 : i32
    %2 = arith.minsi %1, %c0_i32 : i32
    %c0_i32_0 = arith.constant 0 : i32
    %c0_i32_1 = arith.constant 0 : i32
    return %c0_i32_0, %2 : i32, i32
  }
  func.func @transform_2(%arg0: i32, %arg1: i32) -> (i32, i32) {
    %c0_i32 = arith.constant 0 : i32
    %c0_i32_0 = arith.constant 0 : i32
    %c0_i32_1 = arith.constant 0 : i32
    return %c0_i32, %c0_i32_0 : i32, i32
  }
  func.func @transform_3(%arg0: i32, %arg1: i32) -> (i32, i32) {
    %c0_i32 = arith.constant 0 : i32
    %c0_i32_0 = arith.constant 0 : i32
    return %arg0, %c0_i32 : i32, i32
  }
}

</mosaic_0001>

<llo_original>
// kernel: tpu_custom_call.1
$region0: #{tpu_custom_call.1}
  #allocation0 [shape = 'u32[]', space=smem, size = 0x4, offset = 0x4, fixed_abs, tag = 'smem constant byte address 0x4 - core index']
  #allocation1 [shape = 'u32[144,128]{1,0:T(1,128)}', space=vmem, size = 0x12000, scoped, tag = 'internal scratch']
  #allocation2 [shape = 'f32[1,64]{1,0:T(1,128)}', space=vmem, size = 0x200, scoped, tag = 'scratch operand']
  #allocation3 [shape = 'f32[1,64]{1,0:T(1,128)}', space=vmem, size = 0x200, scoped, tag = 'scratch operand']
  #allocation4 [shape = 'f32[1,64]{1,0:T(1,128)}', space=vmem, size = 0x200, scoped, tag = 'scratch operand']
  #allocation5 [shape = 'f32[1,64]{1,0:T(1,128)}', space=vmem, size = 0x200, scoped, tag = 'scratch operand']
  #allocation6 [shape = 'f32[1,64]{1,0:T(1,128)}', space=vmem, size = 0x200, scoped, tag = 'scratch operand']
  %s0 = inlined_call_operand.vmem [shape: f32[64,32], index: 0, kind: input, shape index: {}]
  %s1 = inlined_call_operand.vmem [shape: f32[1,64], index: 1, kind: input, shape index: {}]
  %s2 = inlined_call_operand.vmem [shape: f32[1,32], index: 2, kind: input, shape index: {}]
  %s3 = inlined_call_operand.hbm [shape: f32[16,128], index: 3, kind: output, shape index: {}]
  %s4 = sld [smem:[#allocation0]]
  $region53: #{tpu_custom_call.1} parent=0
    _
  %s6 = ssub.s32 1, %s4
  %s7 = scalar_select 0, %s6, %s4
  $region1: #{tpu_custom_call.1} parent=0
    #allocation7 [shape = 'u8[8192]{0}', space=vmem, size = 0x2000, scoped, tag = 'output window, operand 0']
    #allocation8 [shape = 's32[2]{0}', space=sflag, size = 0x8, scoped, tag = 'scoped memory for tpu_custom_call.1']
    %8 = vsyncpa [#allocation8], 0
    %s9 = scalar_lea.sflag [#allocation8], 1
    %10 = vsyncpa %s9, 0
    loop: start=0, step=1, limit=4
    $region2: #{tpu_custom_call.1} parent=1 // loop_pre_header
      _
    $region3: #{tpu_custom_call.1} parent=1 // loop_header
      %s12 = sphi 0, %s16
      %p13 = scmp.ge.s32.totalorder %s12, 4
      %s19 = sphi 0, %s31
      %s20 = sphi 0, %s27
      %s21 = sphi 0, %s19
      %s22 = sphi 0, %s20
      %s23 = sphi 0, %s21
      %s24 = sphi 0, %s22
      %s40 = sphi 0, %s42
      %s43 = sphi 0, %s40
      %s44 = sphi 0, %s43
      %s60 = sphi 0, %s44
      %s72 = sphi 0, %s74
      %s75 = sphi 0, %s72
      %s76 = sphi 0, %s75
      %s92 = sphi 0, %s76
      %s96 = sphi 0, %s96
      %s98 = sphi 0, %s96
      %s99 = sphi 0, %s98
      %s113 = sphi 0, %s99
      %s119 = sphi 0, %s121
      %s122 = sphi 0, %s119
      %s123 = sphi 0, %s122
      %s139 = sphi 0, %s123
    $region4: #{tpu_custom_call.1} parent=1 // loop_header_branch
      %15 = sbr.rel (%p13) target = $region8
    $region5: #{tpu_custom_call.1} parent=1 // loop_body
      %s17 = ssub.s32 %s12, 1
      %s18 = ssub.s32 %s12, 2
      %s25 = sadd.s32 1, %s20
      %p26 = scmp.ge.s32.totalorder %s25, 1
      %s27 = scalar_select %p26, 0, %s25
      %s28 = sadd.s32 1, %s19
      %s29 = scalar_select %p26, %s28, %s19
      %p30 = scmp.ge.s32.totalorder %s29, 2
      %s31 = scalar_select %p30, 0, %s29
      %s32 = sadd.s32 %s19, %s20
      %p33 = scmp.lt.s32.totalorder %s32, 0
      %s34 = scalar_select %p33, %s32, 0
      %s35 = sadd.s32 %s31, %s27
      %p36 = scmp.lt.s32.totalorder %s35, 0
      %s37 = scalar_select %p36, %s35, 0
      %s38 = ssub.s32 %s34, %s37
      %p39 = scmp.eq.s32.totalorder %s38, 0
      %s41 = sadd.s32 %s40, 1
      %s42 = scalar_select %p39, %s40, %s41
      %p45 = pneg %p39
      %p46 = scmp.eq.s32.totalorder %s12, 1
      %p47 = por %p45, %p46
      %p48 = scmp.ne.s32.totalorder %s40, %s43
      %p49 = scmp.eq.s32.totalorder %s12, 0
      %p50 = por %p48, %p49
      %p51 = scmp.ne.s32.totalorder %s40, %s43
      %p52 = scmp.eq.s32.totalorder %s17, 1
      %p53 = por %p51, %p52
      %p54 = scmp.ne.s32.totalorder %s43, %s44
      %p55 = scmp.eq.s32.totalorder %s17, 0
      %p56 = por %p54, %p55
      %p57 = scmp.ne.s32.totalorder %s43, %s44
      %p58 = scmp.eq.s32.totalorder %s18, 1
      %p59 = por %p57, %p58
      %p61 = scmp.ne.s32.totalorder %s44, %s60
      %p62 = scmp.eq.s32.totalorder %s18, 0
      %p63 = por %p61, %p62
      %s64 = sadd.s32 %s19, %s20
      %p65 = scmp.lt.s32.totalorder %s64, 0
      %s66 = scalar_select %p65, %s64, 0
      %s67 = sadd.s32 %s31, %s27
      %p68 = scmp.lt.s32.totalorder %s67, 0
      %s69 = scalar_select %p68, %s67, 0
      %s70 = ssub.s32 %s66, %s69
      %p71 = scmp.eq.s32.totalorder %s70, 0
      %s73 = sadd.s32 %s72, 1
      %s74 = scalar_select %p71, %s72, %s73
      %p77 = pneg %p71
      %p78 = scmp.eq.s32.totalorder %s12, 1
      %p79 = por %p77, %p78
      %p80 = scmp.ne.s32.totalorder %s72, %s75
      %p81 = scmp.eq.s32.totalorder %s12, 0
      %p82 = por %p80, %p81
      %p83 = scmp.ne.s32.totalorder %s72, %s75
      %p84 = scmp.eq.s32.totalorder %s17, 1
      %p85 = por %p83, %p84
      %p86 = scmp.ne.s32.totalorder %s75, %s76
      %p87 = scmp.eq.s32.totalorder %s17, 0
      %p88 = por %p86, %p87
      %p89 = scmp.ne.s32.totalorder %s75, %s76
      %p90 = scmp.eq.s32.totalorder %s18, 1
      %p91 = por %p89, %p90
      %p93 = scmp.ne.s32.totalorder %s76, %s92
      %p94 = scmp.eq.s32.totalorder %s18, 0
      %p95 = por %p93, %p94
      %s97 = sadd.s32 %s96, 1
      %p100 = scmp.eq.s32.totalorder %s12, 1
      %p101 = scmp.ne.s32.totalorder %s96, %s98
      %p102 = scmp.eq.s32.totalorder %s12, 0
      %p103 = por %p101, %p102
      %p104 = scmp.ne.s32.totalorder %s96, %s98
      %p105 = scmp.eq.s32.totalorder %s17, 1
      %p106 = por %p104, %p105
      %p107 = scmp.ne.s32.totalorder %s98, %s99
      %p108 = scmp.eq.s32.totalorder %s17, 0
      %p109 = por %p107, %p108
      %p110 = scmp.ne.s32.totalorder %s98, %s99
      %p111 = scmp.eq.s32.totalorder %s18, 1
      %p112 = por %p110, %p111
      %p114 = scmp.ne.s32.totalorder %s99, %s113
      %p115 = scmp.eq.s32.totalorder %s18, 0
      %p116 = por %p114, %p115
      %s117 = ssub.s32 %s19, %s31
      %p118 = scmp.eq.s32.totalorder %s117, 0
      %s120 = sadd.s32 %s119, 1
      %s121 = scalar_select %p118, %s119, %s120
      %p124 = pneg %p118
      %p125 = scmp.eq.s32.totalorder %s12, 1
      %p126 = por %p124, %p125
      %p127 = scmp.ne.s32.totalorder %s119, %s122
      %p128 = scmp.eq.s32.totalorder %s12, 0
      %p129 = por %p127, %p128
      %p130 = scmp.ne.s32.totalorder %s119, %s122
      %p131 = scmp.eq.s32.totalorder %s17, 1
      %p132 = por %p130, %p131
      %p133 = scmp.ne.s32.totalorder %s122, %s123
      %p134 = scmp.eq.s32.totalorder %s17, 0
      %p135 = por %p133, %p134
      %p136 = scmp.ne.s32.totalorder %s122, %s123
      %p137 = scmp.eq.s32.totalorder %s18, 1
      %p138 = por %p136, %p137
      %p140 = scmp.ne.s32.totalorder %s123, %s139
      %p141 = scmp.eq.s32.totalorder %s18, 0
      %p142 = por %p140, %p141
      %p143 = scmp.le.s32.totalorder 1, %s12
      %p144 = scmp.lt.s32.totalorder %s12, 3
      %p145 = pnand %p143, %p144
      %p146 = pneg %p145
      // Predicated region
      $region9: #{tpu_custom_call.1} parent=5 // pred_check
        _
      $region10: #{tpu_custom_call.1} parent=5 // pred_check_branch
        %148 = sbr.rel (%p145) target = $region12
      $region11: #{tpu_custom_call.1} parent=5 // pred_region
        %s149 = ssub.s32 %s12, 1
        // Predicated region
        $region13: #{tpu_custom_call.1} parent=11 // pred_check
          %p150 = pneg %p109
        $region14: #{tpu_custom_call.1} parent=11 // pred_check_branch
          %152 = sbr.rel (%p150) target = $region16
        $region15: #{tpu_custom_call.1} parent=11 // pred_region
          _
        $region16: #{tpu_custom_call.1} parent=11 // pred_fallthru
          _
      $region12: #{tpu_custom_call.1} parent=5 // pred_fallthru
        _
      %p153 = scmp.lt.s32.totalorder %s12, 2
      // Predicated region
      $region17: #{tpu_custom_call.1} parent=5 // pred_check
        %p154 = pneg %p153
      $region18: #{tpu_custom_call.1} parent=5 // pred_check_branch
        %156 = sbr.rel (%p154) target = $region20
      $region19: #{tpu_custom_call.1} parent=5 // pred_region
        // Predicated region
        $region21: #{tpu_custom_call.1} parent=19 // pred_check
          %p157 = pneg %p50
        $region22: #{tpu_custom_call.1} parent=19 // pred_check_branch
          %159 = sbr.rel (%p157) target = $region24
        $region23: #{tpu_custom_call.1} parent=19 // pred_region
          %s160 = sadd.s32 %s19, %s20
          %p161 = scmp.lt.s32.totalorder %s160, 0
          %s162 = scalar_select %p161, %s160, 0
          %s163 = smul.u32 8, %s162
          %p164 = scmp.lt.s32.totalorder %s163, 7
          %s165 = scalar_select %p164, %s163, 7
          %s166 = smul.addr %s165, 8
          %s167 = scalar_lea.vmem %s0, %s166
          %s168 = sadd.s32 %s19, %s20
          %p169 = scmp.lt.s32.totalorder %s168, 0
          %s170 = scalar_select %p169, %s168, 0
          %s171 = smul.u32 8, %s170
        $region24: #{tpu_custom_call.1} parent=19 // pred_fallthru
          _
        // Predicated region
        $region25: #{tpu_custom_call.1} parent=19 // pred_check
          %p172 = pneg %p82
        $region26: #{tpu_custom_call.1} parent=19 // pred_check_branch
          %174 = sbr.rel (%p172) target = $region28
        $region27: #{tpu_custom_call.1} parent=19 // pred_region
          %s175 = sadd.s32 %s19, %s20
          %p176 = scmp.lt.s32.totalorder %s175, 0
          %s177 = scalar_select %p176, %s175, 0
          %p178 = scmp.lt.s32.totalorder %s177, 0
          %s179 = scalar_select %p178, %s177, 0
          %s180 = scalar_lea.vmem %s1, %s179
          %s181 = sadd.s32 %s19, %s20
          %p182 = scmp.lt.s32.totalorder %s181, 0
          %s183 = scalar_select %p182, %s181, 0
        $region28: #{tpu_custom_call.1} parent=19 // pred_fallthru
          _
      $region20: #{tpu_custom_call.1} parent=5 // pred_fallthru
        _
      %p184 = scmp.le.s32.totalorder 1, %s12
      %p185 = scmp.lt.s32.totalorder %s12, 3
      %p186 = pnand %p184, %p185
      %p187 = pneg %p186
      // Predicated region
      $region29: #{tpu_custom_call.1} parent=5 // pred_check
        _
      $region30: #{tpu_custom_call.1} parent=5 // pred_check_branch
        %189 = sbr.rel (%p186) target = $region32
      $region31: #{tpu_custom_call.1} parent=5 // pred_region
        %s190 = ssub.s32 %s12, 1
        %s191 = sadd.s32 %s21, %s22
        %p192 = scmp.lt.s32.totalorder %s191, 0
        %s193 = scalar_select %p192, %s191, 0
        %s194 = smul.u32 8, %s193
        %p195 = scmp.lt.s32.totalorder %s194, 7
        %s196 = scalar_select %p195, %s194, 7
        %s197 = smul.addr %s196, 8
        %s198 = scalar_lea.vmem %s0, %s197
        %p199 = pneg %p56
        %p200 = pneg %p53
        %s201 = sadd.s32 %s21, %s22
        %p202 = scmp.lt.s32.totalorder %s201, 0
        %s203 = scalar_select %p202, %s201, 0
        %p204 = scmp.lt.s32.totalorder %s203, 0
        %s205 = scalar_select %p204, %s203, 0
        %s206 = scalar_lea.vmem %s1, %s205
        %p207 = pneg %p88
        %p208 = pneg %p85
        %p209 = pneg %p109
        %p210 = pneg %p106
        %p211 = pneg %p135
        %p212 = pneg %p132
        %s213 = sand.u32 %s122, 1
        %s214 = scalar_lea.sflag [#allocation8], %s213
        %s215 = sand.u32 %s122, 1
        %s216 = smul.addr %s215, 8
        %s217 = scalar_lea.vmem [#allocation7], %s216
        %s218 = sadd.s32 %s21, %s22
        %p219 = scmp.lt.s32.totalorder %s218, 0
        %s220 = scalar_select %p219, %s218, 0
        %s221 = smul.u32 8, %s220
        %p222 = scmp.lt.s32.totalorder %s221, 7
        %s223 = scalar_select %p222, %s221, 7
        %s224 = smul.addr %s223, 8
        %s225 = scalar_lea.vmem %s0, %s224
        %s226 = sadd.s32 %s21, %s22
        %p227 = scmp.lt.s32.totalorder %s226, 0
        %s228 = scalar_select %p227, %s226, 0
        %s229 = smul.u32 8, %s228
        %s230 = sadd.s32 %s21, %s22
        %p231 = scmp.lt.s32.totalorder %s230, 0
        %s232 = scalar_select %p231, %s230, 0
        %p233 = scmp.lt.s32.totalorder %s232, 0
        %s234 = scalar_select %p233, %s232, 0
        %s235 = scalar_lea.vmem %s1, %s234
        %s236 = sadd.s32 %s21, %s22
        %p237 = scmp.lt.s32.totalorder %s236, 0
        %s238 = scalar_select %p237, %s236, 0
        %p239 = scmp.eq.s32.totalorder %s22, 0
        // Predicated region
        $region33: #{tpu_custom_call.1} parent=31 // pred_check
          %p240 = pneg %p239
        $region34: #{tpu_custom_call.1} parent=31 // pred_check_branch
          %242 = sbr.rel (%p240) target = $region36
        $region35: #{tpu_custom_call.1} parent=31 // pred_region
          %vm243 = vcmask 516096
          %244 = vst.msk [vmem:[#allocation2] sm:$0x1] %vm243, 0.0
          %245 = vst.msk [vmem:[#allocation3] sm:$0x1] %vm243, 0.0
          %246 = vst.msk [vmem:[#allocation4] sm:$0x1] %vm243, 0.0
          %247 = vst.msk [vmem:[#allocation5] sm:$0x1] %vm243, 0.0
          %248 = vst.msk [vmem:[#allocation6] sm:$0x1] %vm243, 0.0
        $region36: #{tpu_custom_call.1} parent=31 // pred_fallthru
          _
        %v249 = vld [vmem:[%s225] sm:$0xff]
        %v250 = vld [vmem:[%s225 + $0x8] sm:$0xff]
        %v251 = vld [vmem:[%s225 + $0x10] sm:$0xff]
        %v252 = vld [vmem:[%s225 + $0x18] sm:$0xff]
        %v253 = vld [vmem:[%s225 + $0x20] sm:$0xff]
        %v254 = vld [vmem:[%s225 + $0x28] sm:$0xff]
        %v255 = vld [vmem:[%s225 + $0x30] sm:$0xff]
        %v256 = vld [vmem:[%s225 + $0x38] sm:$0xff]
        %v257 = vld [vmem:[%s235] sm:$0x1]
        %v258 = vld [vmem:[%s2] sm:$0x1]
        %vm259 = vcmask 261120
        %v261 = vsel %vm259, %v258, 0
        %v264 = vsel %vm259, %v249, 0
        %v267 = vsel %vm259, %v250, 0
        %v270 = vsel %vm259, %v251, 0
        %v273 = vsel %vm259, %v252, 0
        %v276 = vsel %vm259, %v253, 0
        %v279 = vsel %vm259, %v254, 0
        %v282 = vsel %vm259, %v255, 0
        %v285 = vsel %vm259, %v256, 0
        %287 = vmatprep.subr.mxu0 0.0
        %288 = vmatpush1.xpose.msra.mxu0 0.0
        %289 = vmatprep.subr.mxu0 0.0
        %290 = vmatpush1.xpose.msra.mxu0 0.0
        %291 = vmatprep.subr.mxu0 0.0
        %292 = vmatpush1.xpose.msra.mxu0 0.0
        %293 = vmatprep.subr.mxu0 0.0
        %294 = vmatpush1.xpose.msra.mxu0 0.0
        %295 = vmatprep.subr.mxu0 0.0
        %296 = vmatpush1.xpose.msra.mxu0 0.0
        %297 = vmatprep.subr.mxu0 0.0
        %298 = vmatpush1.xpose.msra.mxu0 0.0
        %299 = vmatprep.subr.mxu0 0.0
        %300 = vmatpush1.xpose.msra.mxu0 0.0
        %301 = vmatprep.subr.mxu0 0.0
        %302 = vmatpush1.xpose.msra.mxu0 0.0
        %303 = vmatprep.subr.mxu0 0.0
        %304 = vmatpush1.xpose.msra.mxu0 %v285
        %305 = vmatprep.subr.mxu0 0.0
        %306 = vmatpush1.xpose.msra.mxu0 %v282
        %307 = vmatprep.subr.mxu0 0.0
        %308 = vmatpush1.xpose.msra.mxu0 %v279
        %309 = vmatprep.subr.mxu0 0.0
        %310 = vmatpush1.xpose.msra.mxu0 %v276
        %311 = vmatprep.subr.mxu0 0.0
        %312 = vmatpush1.xpose.msra.mxu0 %v273
        %313 = vmatprep.subr.mxu0 0.0
        %314 = vmatpush1.xpose.msra.mxu0 %v270
        %315 = vmatprep.subr.mxu0 0.0
        %316 = vmatpush1.xpose.msra.mxu0 %v267
        %317 = vmatprep.subr.mxu0 0.0
        %318 = vmatpush1.xpose.msra.mxu0 %v264
        %319 = vmatprep.subr.mxu0 0.0
        %320 = vmatpush2.xpose.msra.mxu0 0.0
        %321 = vmatprep.subr.mxu0 0.0
        %322 = vmatpush2.xpose.msra.mxu0 0.0
        %323 = vmatprep.subr.mxu0 0.0
        %324 = vmatpush2.xpose.msra.mxu0 0.0
        %325 = vmatprep.subr.mxu0 0.0
        %326 = vmatpush2.xpose.msra.mxu0 0.0
        %327 = vmatprep.subr.mxu0 0.0
        %328 = vmatpush2.xpose.msra.mxu0 0.0
        %329 = vmatprep.subr.mxu0 0.0
        %330 = vmatpush2.xpose.msra.mxu0 0.0
        %331 = vmatprep.subr.mxu0 0.0
        %332 = vmatpush2.xpose.msra.mxu0 0.0
        %333 = vmatprep.subr.mxu0 0.0
        %334 = vmatpush2.xpose.msra.mxu0 0.0
        %335 = vmatprep.subr.mxu0 0.0
        %336 = vmatpush2.xpose.msra.mxu0 0.0
        %337 = vmatprep.subr.mxu0 0.0
        %338 = vmatpush2.xpose.msra.mxu0 0.0
        %339 = vmatprep.subr.mxu0 0.0
        %340 = vmatpush2.xpose.msra.mxu0 0.0
        %341 = vmatprep.subr.mxu0 0.0
        %342 = vmatpush2.xpose.msra.mxu0 0.0
        %343 = vmatprep.subr.mxu0 0.0
        %344 = vmatpush2.xpose.msra.mxu0 0.0
        %345 = vmatprep.subr.mxu0 0.0
        %346 = vmatpush2.xpose.msra.mxu0 0.0
        %347 = vmatprep.subr.mxu0 0.0
        %348 = vmatpush2.xpose.msra.mxu0 0.0
        %349 = vmatprep.subr.mxu0 0.0
        %350 = vmatpush2.xpose.msra.mxu0 0.0
        %351 = vmatprep.mubr.f32.mxu0 0.0
        %352 = vmatmul.mubr.f32.gmra.mxu0 %v261
        %v353 = vpop.f32.mrf.mxu0
        %v354 = vadd.f32 0.0, %v353
        %v355 = vpop.f32.mrf.mxu0
        %356 = vdwg.mxu0
        %v357 = vmax.f32 %v354, 0.001
        %v358 = vmin.f32 %v357, 0.999
        %v359 = vmax.f32 %v358, 1e-06
        %v360 = vmin.f32 %v359, 0.999999
        %v361 = vmul.f32 %v360, 2.0
        %v362 = vsub.f32 %v361, 1.0
        %v363 = vsub.f32 0.0, %v362
        %v364 = vmul.f32 %v362, %v363
        %v365 = vadd.f32 %v364, 1.0
        %v366 = vlog2.pop %v365
        %v367 = vmul.f32 %v366, 0.6931472
        %v368 = vmul.f32 -0.5, %v364
        %v369 = vadd.f32 %v368, 1.0
        %v370 = vmul.f32 %v369, %v364
        %v371 = vand.u32 2147483647, %v364
        %vm372 = vcmp.lt.f32.partialorder %v371, 0.0004427343
        %v373 = vsel %vm372, %v370, %v367
        %v374 = vsub.f32 0.0, %v373
        %vm375 = vcmp.lt.f32.partialorder %v374, 5.0
        %v376 = vsub.f32 %v374, 2.5
        %v377 = vrsqrt.pop %v374
        %v378 = vmul.f32 %v374, %v377
        %vm379 = vcmp.eq.f32.partialorder %v374, inf
        %v380 = vsel %vm379, %v374, %v378
        %vm381 = vcmp.eq.f32.partialorder %v374, 0.0
        %v382 = vand.u32 %v374, 2147483648
        %v383 = vsel %vm381, %v382, %v380
        %v384 = vsub.f32 %v383, 3.0
        %v385 = vsel %vm375, %v376, %v384
        %v386 = vsel %vm375, 2.8102264e-08, -0.00020021426
        %v387 = vsel %vm375, 3.4327394e-07, 0.00010095056
        %v388 = vmul.f32 %v386, %v385
        %v389 = vadd.f32 %v387, %v388
        %v390 = vsel %vm375, -3.5233877e-06, 0.0013493432
        %v391 = vmul.f32 %v389, %v385
        %v392 = vadd.f32 %v390, %v391
        %v393 = vsel %vm375, -4.3915065e-06, -0.0036734284
        %v394 = vmul.f32 %v392, %v385
        %v395 = vadd.f32 %v393, %v394
        %v396 = vsel %vm375, 0.00021858087, 0.0057395077
        %v397 = vmul.f32 %v395, %v385
        %v398 = vadd.f32 %v396, %v397
        %v399 = vsel %vm375, -0.001253725, -0.0076224613
        %v400 = vmul.f32 %v398, %v385
        %v401 = vadd.f32 %v399, %v400
        %v402 = vsel %vm375, -0.0041776816, 0.0094388705
        %v403 = vmul.f32 %v401, %v385
        %v404 = vadd.f32 %v402, %v403
        %v405 = vsel %vm375, 0.24664073, 1.001674
        %v406 = vmul.f32 %v404, %v385
        %v407 = vadd.f32 %v405, %v406
        %v408 = vsel %vm375, 1.5014094, 2.8329768
        %v409 = vmul.f32 %v407, %v385
        %v410 = vadd.f32 %v408, %v409
        %v411 = vand.u32 2147483647, %v362
        %vm412 = vcmp.eq.f32.partialorder %v411, 1.0
        %v413 = vmul.f32 %v362, inf
        %v414 = vmul.f32 %v410, %v362
        %v415 = vsel %vm412, %v413, %v414
        %v416 = vmul.f32 %v415, 1.4142135
        %v417 = vmax.f32 %v257, 1e-06
        %v418 = vmin.f32 %v417, 0.999999
        %v419 = vmul.f32 %v418, 2.0
        %v420 = vsub.f32 %v419, 1.0
        %v421 = vsub.f32 0.0, %v420
        %v422 = vmul.f32 %v420, %v421
        %v423 = vadd.f32 %v422, 1.0
        %v424 = vlog2.pop %v423
        %v425 = vmul.f32 %v424, 0.6931472
        %v426 = vmul.f32 -0.5, %v422
        %v427 = vadd.f32 %v426, 1.0
        %v428 = vmul.f32 %v427, %v422
        %v429 = vand.u32 2147483647, %v422
        %vm430 = vcmp.lt.f32.partialorder %v429, 0.0004427343
        %v431 = vsel %vm430, %v428, %v425
        %v432 = vsub.f32 0.0, %v431
        %vm433 = vcmp.lt.f32.partialorder %v432, 5.0
        %v434 = vsub.f32 %v432, 2.5
        %v435 = vrsqrt.pop %v432
        %v436 = vmul.f32 %v432, %v435
        %vm437 = vcmp.eq.f32.partialorder %v432, inf
        %v438 = vsel %vm437, %v432, %v436
        %vm439 = vcmp.eq.f32.partialorder %v432, 0.0
        %v440 = vand.u32 %v432, 2147483648
        %v441 = vsel %vm439, %v440, %v438
        %v442 = vsub.f32 %v441, 3.0
        %v443 = vsel %vm433, %v434, %v442
        %v444 = vsel %vm433, 2.8102264e-08, -0.00020021426
        %v445 = vsel %vm433, 3.4327394e-07, 0.00010095056
        %v446 = vmul.f32 %v444, %v443
        %v447 = vadd.f32 %v445, %v446
        %v448 = vsel %vm433, -3.5233877e-06, 0.0013493432
        %v449 = vmul.f32 %v447, %v443
        %v450 = vadd.f32 %v448, %v449
        %v451 = vsel %vm433, -4.3915065e-06, -0.0036734284
        %v452 = vmul.f32 %v450, %v443
        %v453 = vadd.f32 %v451, %v452
        %v454 = vsel %vm433, 0.00021858087, 0.0057395077
        %v455 = vmul.f32 %v453, %v443
        %v456 = vadd.f32 %v454, %v455
        %v457 = vsel %vm433, -0.001253725, -0.0076224613
        %v458 = vmul.f32 %v456, %v443
        %v459 = vadd.f32 %v457, %v458
        %v460 = vsel %vm433, -0.0041776816, 0.0094388705
        %v461 = vmul.f32 %v459, %v443
        %v462 = vadd.f32 %v460, %v461
        %v463 = vsel %vm433, 0.24664073, 1.001674
        %v464 = vmul.f32 %v462, %v443
        %v465 = vadd.f32 %v463, %v464
        %v466 = vsel %vm433, 1.5014094, 2.8329768
        %v467 = vmul.f32 %v465, %v443
        %v468 = vadd.f32 %v466, %v467
        %v469 = vand.u32 2147483647, %v420
        %vm470 = vcmp.eq.f32.partialorder %v469, 1.0
        %v471 = vmul.f32 %v420, inf
        %v472 = vmul.f32 %v468, %v420
        %v473 = vsel %vm470, %v471, %v472
        %v474 = vmul.f32 %v473, 1.4142135
        %s475 = sadd.s32 %s21, %s22
        %s476 = smul.u32 %s475, 64
        %v477 = vlaneseq
        %v478 = vand.u32 %v477, 127
        %v479 = vstv %s476
        %v480 = vadd.s32 %v479, %v478
        %vm481 = vcmp.lt.s32.totalorder %v480, 64
        %v482 = vsel %vm481, %v416, 0.0
        %v483 = vsel %vm481, %v474, 0.0
        %v484 = vld [vmem:[#allocation2] sm:$0x1]
        %v485 = vadd.f32 %v484, %v482
        %vm486 = vcmask 516096
        %487 = vst.msk [vmem:[#allocation2] sm:$0x1] %vm486, %v485
        %v488 = vld [vmem:[#allocation3] sm:$0x1]
        %v489 = vadd.f32 %v488, %v483
        %490 = vst.msk [vmem:[#allocation3] sm:$0x1] %vm486, %v489
        %v491 = vld [vmem:[#allocation4] sm:$0x1]
        %v492 = vmul.f32 %v482, %v483
        %v493 = vadd.f32 %v491, %v492
        %494 = vst.msk [vmem:[#allocation4] sm:$0x1] %vm486, %v493
        %v495 = vld [vmem:[#allocation5] sm:$0x1]
        %v496 = vmul.f32 %v482, %v482
        %v497 = vadd.f32 %v495, %v496
        %498 = vst.msk [vmem:[#allocation5] sm:$0x1] %vm486, %v497
        %v499 = vld [vmem:[#allocation6] sm:$0x1]
        %v500 = vmul.f32 %v483, %v483
        %v501 = vadd.f32 %v499, %v500
        %502 = vst.msk [vmem:[#allocation6] sm:$0x1] %vm486, %v501
        // Predicated region
        $region37: #{tpu_custom_call.1} parent=31 // pred_check
          %p503 = pneg %p239
        $region38: #{tpu_custom_call.1} parent=31 // pred_check_branch
          %505 = sbr.rel (%p503) target = $region40
        $region39: #{tpu_custom_call.1} parent=31 // pred_region
          %v506 = vld [vmem:[#allocation2] sm:$0x1]
          %v507 = vsel %vm486, %v506, 0.0
          %508 = vadd.xlane.f32.xlu0 %v507
          %v509 = vpop.xlane.xlu0 %508
          %v510 = vrot.slane %v509, 4
          %v511 = vadd.f32 %v509, %v510
          %v512 = vrot.slane %v511, 2
          %v513 = vadd.f32 %v511, %v512
          %v514 = vrot.slane %v513, 1
          %v515 = vadd.f32 %v513, %v514
          %s516 = vtos %v515
          %v517 = vld [vmem:[#allocation3] sm:$0x1]
          %v518 = vsel %vm486, %v517, 0.0
          %519 = vadd.xlane.f32.xlu0 %v518
          %v520 = vpop.xlane.xlu0 %519
          %v521 = vrot.slane %v520, 4
          %v522 = vadd.f32 %v520, %v521
          %v523 = vrot.slane %v522, 2
          %v524 = vadd.f32 %v522, %v523
          %v525 = vrot.slane %v524, 1
          %v526 = vadd.f32 %v524, %v525
          %s527 = vtos %v526
          %v528 = vld [vmem:[#allocation4] sm:$0x1]
          %v529 = vsel %vm486, %v528, 0.0
          %530 = vadd.xlane.f32.xlu0 %v529
          %v531 = vpop.xlane.xlu0 %530
          %v532 = vrot.slane %v531, 4
          %v533 = vadd.f32 %v531, %v532
          %v534 = vrot.slane %v533, 2
          %v535 = vadd.f32 %v533, %v534
          %v536 = vrot.slane %v535, 1
          %v537 = vadd.f32 %v535, %v536
          %s538 = vtos %v537
          %v539 = vld [vmem:[#allocation5] sm:$0x1]
          %v540 = vsel %vm486, %v539, 0.0
          %541 = vadd.xlane.f32.xlu0 %v540
          %v542 = vpop.xlane.xlu0 %541
          %v543 = vrot.slane %v542, 4
          %v544 = vadd.f32 %v542, %v543
          %v545 = vrot.slane %v544, 2
          %v546 = vadd.f32 %v544, %v545
          %v547 = vrot.slane %v546, 1
          %v548 = vadd.f32 %v546, %v547
          %s549 = vtos %v548
          %v550 = vld [vmem:[#allocation6] sm:$0x1]
          %v551 = vsel %vm486, %v550, 0.0
          %552 = vadd.xlane.f32.xlu0 %v551
          %v553 = vpop.xlane.xlu0 %552
          %v554 = vrot.slane %v553, 4
          %v555 = vadd.f32 %v553, %v554
          %v556 = vrot.slane %v555, 2
          %v557 = vadd.f32 %v555, %v556
          %v558 = vrot.slane %v557, 1
          %v559 = vadd.f32 %v557, %v558
          %s560 = vtos %v559
          %v561 = vlaneseq
          %v562 = vshrl.u32 %v561, 7
          %vm563 = vcmp.eq.s32.totalorder %v562, 0
          %vm564 = vcmp.eq.s32.totalorder %v478, 0
          %vm565 = vmand %vm563, %vm564
          %v566 = vstv %s516
          %v567 = vsel %vm565, %v566, 0.0
          %vm568 = vcmp.eq.s32.totalorder %v478, 1
          %vm569 = vmand %vm563, %vm568
          %v570 = vstv %s527
          %v571 = vsel %vm569, %v570, %v567
          %vm572 = vcmp.eq.s32.totalorder %v478, 2
          %vm573 = vmand %vm563, %vm572
          %v574 = vstv %s538
          %v575 = vsel %vm573, %v574, %v571
          %vm576 = vcmp.eq.s32.totalorder %v478, 3
          %vm577 = vmand %vm563, %vm576
          %v578 = vstv %s549
          %v579 = vsel %vm577, %v578, %v575
          %vm580 = vcmp.eq.s32.totalorder %v478, 4
          %vm581 = vmand %vm563, %vm580
          %v582 = vstv %s560
          %v583 = vsel %vm581, %v582, %v579
          %584 = vst [vmem:[%s217] sm:$0xff] %v583
        $region40: #{tpu_custom_call.1} parent=31 // pred_fallthru
          _
        %s585 = sand.u32 %s122, 1
        %s586 = scalar_lea.sflag [#allocation8], %s585
        %s587 = sand.u32 %s122, 1
        %s588 = smul.addr %s587, 8
        %s589 = scalar_lea.vmem [#allocation7], %s588
        // Predicated region
        $region41: #{tpu_custom_call.1} parent=31 // pred_check
          %p590 = pneg %p132
        $region42: #{tpu_custom_call.1} parent=31 // pred_check_branch
          %592 = sbr.rel (%p590) target = $region44
        $region43: #{tpu_custom_call.1} parent=31 // pred_region
          %s594 = ssub.s32 128, 128
          %595 = vsyncadd %s586, %s594
          %s596 = smul.addr %s21, 128
          %s597 = scalar_lea.hbm %s3, %s596
          %s599 = sshll.u32 %s589, 4
          %s600 = int_to_ptr.vmem [resolvable:$true] %s599
          %602 = dma.vmem_to_hbm [thread:$0]  %s600, 128, %s597, %s586
        $region44: #{tpu_custom_call.1} parent=31 // pred_fallthru
          _
      $region32: #{tpu_custom_call.1} parent=5 // pred_fallthru
        _
      %p603 = scmp.le.s32.totalorder 2, %s12
      // Predicated region
      $region45: #{tpu_custom_call.1} parent=5 // pred_check
        %p604 = pneg %p603
      $region46: #{tpu_custom_call.1} parent=5 // pred_check_branch
        %606 = sbr.rel (%p604) target = $region48
      $region47: #{tpu_custom_call.1} parent=5 // pred_region
        %s607 = ssub.s32 %s12, 2
        // Predicated region
        $region49: #{tpu_custom_call.1} parent=47 // pred_check
          %p608 = pneg %p138
        $region50: #{tpu_custom_call.1} parent=47 // pred_check_branch
          %610 = sbr.rel (%p608) target = $region52
        $region51: #{tpu_custom_call.1} parent=47 // pred_region
          %s611 = sand.u32 %s123, 1
          %s612 = scalar_lea.sflag [#allocation8], %s611
          %s613 = sand.u32 %s123, 1
          %s614 = smul.addr %s613, 8
          %s615 = scalar_lea.vmem [#allocation7], %s614
          %616 = dma.done %s612, 128
        $region52: #{tpu_custom_call.1} parent=47 // pred_fallthru
          _
      $region48: #{tpu_custom_call.1} parent=5 // pred_fallthru
        _
    $region6: #{tpu_custom_call.1} parent=1 // loop_footer
      %s16 = sadd.s32 1, %s12
    $region7: #{tpu_custom_call.1} parent=1 // loop_footer_branch
      %11 = sbr.rel target = $region3
    $region8: #{tpu_custom_call.1} parent=1 // loop_exit
      _
    %617 = vsyncpa [#allocation8], 1
    %s618 = scalar_lea.sflag [#allocation8], 1
    %619 = vsyncpa %s618, 1

</llo_original>
